<compile_context>
chip_gen: v5e
topology: v5e:2x2
jax: 0.10.0
libtpu: 0.0.40
codegen_flags: <defaults>
</compile_context>

<pallas_src>
import jax
import jax.numpy as jnp
from jax.experimental import pallas as pl
from jax.experimental.pallas import tpu as pltpu

BN_EPS = 1e-5
LANES = 128                       # lane width of the 2D slab
MAX_TILE_ROWS = 2048              # 2048 x 128 x 4B = 1 MiB streamed tiles
RESIDENT_MAX_SLAB_BYTES = 6 << 20   # resident path: conservative for v7x's 64 MiB VMEM
RESIDENT_VMEM_LIMIT_BYTES = 48 << 20


def _cdiv(a, b):
    return -(-a // b)


def _round_up(x, m):
    return _cdiv(x, m) * m


# --------------------------------------------------------------------------------------
# VMEM-resident single-pass kernel (slab lives in VMEM; 2*P HBM traffic)
# --------------------------------------------------------------------------------------
def _make_resident_kernel(p_valid, n_pad):
    inv_p = 1.0 / float(p_valid)
    n_pad_f = float(n_pad)

    def kernel(w_ref, b_ref, g_ref, be_ref, x_ref, o_ref):
        x = x_ref[...]
        mean_x = jnp.sum(x, keepdims=True) * inv_p              # (1, 1)
        d = x - mean_x
        # Centered (two-pass) variance; each host-padded zero contributes mean^2 -> subtract.
        var_x = (jnp.sum(d * d, keepdims=True) - n_pad_f * (mean_x * mean_x)) * inv_p
        var_x = jnp.maximum(var_x, 0.0)

        w = w_ref[...]
        b = b_ref[...]
        g = g_ref[...]
        be = be_ref[...]
        # y = w*x + b  ->  mean_y = w*mean_x + b,  var_y = w^2 * var_x (biased, train mode)
        mean_y = w * mean_x + b
        var_y = (w * w) * var_x
        a = g * jax.lax.rsqrt(var_y + BN_EPS)
        scale = w * a
        shift = (b - mean_y) * a + be

        y = x * scale + shift
        o_ref[...] = jnp.maximum(y, 0.0) + x

    return kernel


# --------------------------------------------------------------------------------------
# Streaming pass 1: per-tile partial sum(x) / sum(x*x)  (fully parallel grid)
# --------------------------------------------------------------------------------------
def _make_stats_kernel(tile_rows, valid_rows, has_overhang):
    groups = tile_rows // 8

    def kernel(x_ref, sum_ref, sq_ref):
        def emit(x):
            # (tile_rows, 128) -> (groups, 8, 128) is a layout no-op; the axis-0 reduce is
            # pure vreg adds, so the hot loop stays on the vld/VALU slots.
            xr = x.reshape(groups, 8, LANES)
            sum_ref[...] = jnp.sum(xr, axis=0, keepdims=True)
            sq_ref[...] = jnp.sum(xr * xr, axis=0, keepdims=True)

        if has_overhang:
            t = pl.program_id(0)
            last = pl.num_programs(0) - 1

            @pl.when(t == last)
            def _():
                # Only the final tile hangs past the slab edge: mask its OOB garbage rows.
                row = jax.lax.broadcasted_iota(jnp.int32, (tile_rows, LANES), 0)
                valid = (t * tile_rows + row) < valid_rows
                emit(jnp.where(valid, x_ref[...], 0.0))

            @pl.when(t != last)
            def _():
                emit(x_ref[...])
        else:
            emit(x_ref[...])

    return kernel


# --------------------------------------------------------------------------------------
# Streaming pass 2: fused scale/shift + ReLU + residual  (fully parallel grid)
# --------------------------------------------------------------------------------------
def _apply_kernel(a_ref, b_ref, x_ref, o_ref):
    x = x_ref[...]
    y = x * a_ref[...] + b_ref[...]
    o_ref[...] = jnp.maximum(y, 0.0) + x


# --------------------------------------------------------------------------------------
# Wrapper
# --------------------------------------------------------------------------------------
def conv_second_moment_net(inp, conv_w, conv_b, bn_gamma, bn_beta, *,
                           force_streaming=False, max_tile_rows=MAX_TILE_ROWS):
    """Forward of ConvSecondMomentNet.

    inp:      (N, 1, H, W) float32 (NCHW)
    conv_w:   (1, 1, 1, 1) Conv2d weight (Cout, Cin, kH, kW)
    conv_b:   (1,)          Conv2d bias
    bn_gamma, bn_beta: (1,) BatchNorm2d affine params
    """
    n, cin, h, w = inp.shape
    cout = conv_w.shape[0]
    assert cin == 1 and cout == 1, "specialized for the module's single-channel 1x1 conv"

    p = n * h * w
    rows = _cdiv(p, LANES)
    lane_pad = rows * LANES - p          # < 128 zeros, only when p % 128 != 0

    # NCHW with C==1 is contiguous -> flat view; (rows, 128) reshape is copy-free when
    # lane_pad == 0. Zero padding is harmless to the sums (we divide by the true p).
    x_flat = inp.reshape(p).astype(jnp.float32)
    if lane_pad:
        x_flat = jnp.pad(x_flat, (0, lane_pad))
    x2d = x_flat.reshape(rows, LANES)

    slab_bytes = rows * LANES * 4

    if (not force_streaming) and slab_bytes <= RESIDENT_MAX_SLAB_BYTES:
        # ----------------------- VMEM-resident single pass --------------------------
        # TODO(synk): on v7x the resident slab could be split across both TensorCores.
        w_s = conv_w.reshape(1, 1).astype(jnp.float32)
        b_s = conv_b.reshape(1, 1).astype(jnp.float32)
        g_s = bn_gamma.reshape(1, 1).astype(jnp.float32)
        be_s = bn_beta.reshape(1, 1).astype(jnp.float32)
        vmem_full = pl.BlockSpec(memory_space=pltpu.MemorySpace.VMEM)
        out2d = pl.pallas_call(
            _make_resident_kernel(p, lane_pad),
            out_shape=jax.ShapeDtypeStruct((rows, LANES), jnp.float32),
            in_specs=[vmem_full, vmem_full, vmem_full, vmem_full, vmem_full],
            out_specs=vmem_full,
            compiler_params=pltpu.CompilerParams(
                vmem_limit_bytes=RESIDENT_VMEM_LIMIT_BYTES),
        )(w_s, b_s, g_s, be_s, x2d)
    else:
        # --------------------------- Streaming two-pass -----------------------------
        num_tiles = _cdiv(rows, max_tile_rows)
        tile_rows = _round_up(_cdiv(rows, num_tiles), 8)   # balanced, sublane-aligned
        has_overhang = (num_tiles * tile_rows != rows)     # last tile partially OOB

        # Pass 1: per-tile partial sums (each tile writes its own output block -> parallel).
        sums, sqs = pl.pallas_call(
            _make_stats_kernel(tile_rows, rows, has_overhang),
            out_shape=(jax.ShapeDtypeStruct((num_tiles, 8, LANES), jnp.float32),
                       jax.ShapeDtypeStruct((num_tiles, 8, LANES), jnp.float32)),
            grid=(num_tiles,),
            in_specs=[pl.BlockSpec((tile_rows, LANES), lambda t: (t, 0))],
            out_specs=(pl.BlockSpec((1, 8, LANES), lambda t: (t, 0, 0)),
                       pl.BlockSpec((1, 8, LANES), lambda t: (t, 0, 0))),
            compiler_params=pltpu.CompilerParams(
                dimension_semantics=("parallel",)),
        )(x2d)

        # Tiny combine in plain JAX: fold conv + BN(batch stats) into one scale/shift.
        # TODO(synk): single-pass E[x^2]-mean^2 can lose precision when |mean| >> std;
        #             f32 per-tile partials keep it within 1e-4 here (Welford otherwise).
        inv_p = 1.0 / float(p)
        w_s = conv_w.reshape(()).astype(jnp.float32)
        b_s = conv_b.reshape(()).astype(jnp.float32)
        g_s = bn_gamma.reshape(()).astype(jnp.float32)
        be_s = bn_beta.reshape(()).astype(jnp.float32)
        mean_x = jnp.sum(sums) * inv_p
        var_x = jnp.maximum(jnp.sum(sqs) * inv_p - mean_x * mean_x, 0.0)
        mean_y = w_s * mean_x + b_s
        var_y = (w_s * w_s) * var_x
        a = g_s * jax.lax.rsqrt(var_y + BN_EPS)
        a_scale = (w_s * a).reshape(1, 1).astype(jnp.float32)
        b_shift = ((b_s - mean_y) * a + be_s).reshape(1, 1).astype(jnp.float32)

        # Pass 2: fused scale/shift + ReLU + residual (parallel over tiles).
        param_spec = pl.BlockSpec((1, 1), lambda t: (0, 0))
        out2d = pl.pallas_call(
            _apply_kernel,
            out_shape=jax.ShapeDtypeStruct((rows, LANES), jnp.float32),
            grid=(num_tiles,),
            in_specs=[param_spec, param_spec,
                      pl.BlockSpec((tile_rows, LANES), lambda t: (t, 0))],
            out_specs=pl.BlockSpec((tile_rows, LANES), lambda t: (t, 0)),
            compiler_params=pltpu.CompilerParams(
                dimension_semantics=("parallel",)),
        )(a_scale, b_shift, x2d)

    out_flat = out2d.reshape(rows * LANES)
    if lane_pad:
        out_flat = out_flat[:p]
    return out_flat.reshape(n, cin, h, w).astype(inp.dtype)


# --------------------------------------------------------------------------------------
# Pure-JAX reference of the PyTorch forward (train-mode BN batch statistics)
# --------------------------------------------------------------------------------------
def _reference(inp, conv_w, conv_b, bn_gamma, bn_beta):
    cout = conv_w.shape[0]
    y = jnp.einsum('nchw,oc->nohw', inp, conv_w[:, :, 0, 0]) + conv_b.reshape(1, cout, 1, 1)
    mean = jnp.mean(y, axis=(0, 2, 3), keepdims=True)
    var = jnp.mean((y - mean) ** 2, axis=(0, 2, 3), keepdims=True)
    y = (y - mean) / jnp.sqrt(var + BN_EPS)
    y = y * bn_gamma.reshape(1, cout, 1, 1) + bn_beta.reshape(1, cout, 1, 1)
    return jnp.maximum(y, 0.0) + inp


if __name__ == "__main__":
    C = 1
    # Deterministic parameters, exactly as the module's __init__ builds them:
    # conv weight = ones, conv bias = zeros, bn weight = ones, bn bias = zeros.
    conv_w = jnp.ones((C, C, 1, 1), dtype=jnp.float32)
    conv_b = jnp.zeros((C,), dtype=jnp.float32)
    bn_gamma = jnp.ones((C,), dtype=jnp.float32)
    bn_beta = jnp.zeros((C,), dtype=jnp.float32)

    def _check(shape, **kw):
        x = jax.random.normal(jax.random.PRNGKey(0), shape, dtype=jnp.float32)
        out = jax.block_until_ready(
            conv_second_moment_net(x, conv_w, conv_b, bn_gamma, bn_beta, **kw))
        ref = _reference(x, conv_w, conv_b, bn_gamma, bn_beta)
        assert out.shape == x.shape
        assert jnp.allclose(out, ref, atol=1e-4, rtol=1e-4), f"mismatch for {shape} {kw}"

    _check((2, 1, 16, 16))                                        # small, resident, zero-copy
    _check((2, 1, 15, 15))                                        # lane-pad path, resident
    _check((3, 1, 224, 224))                                      # larger, resident, zero-copy
    _check((3, 1, 224, 224), force_streaming=True, max_tile_rows=256)  # multi-tile + overhang mask
    _check((1, 1, 100, 100), force_streaming=True, max_tile_rows=40)   # streaming + pad + overhang

    print("KERNEL_OK")
</pallas_src>

<mosaic_0001>
module attributes {stable_mosaic.version = 11 : i64} {
  func.func @kernel(%arg0: memref<1x1xf32, #tpu.memory_space<vmem>>, %arg1: memref<1x1xf32, #tpu.memory_space<vmem>>, %arg2: memref<1x1xf32, #tpu.memory_space<vmem>>, %arg3: memref<1x1xf32, #tpu.memory_space<vmem>>, %arg4: memref<4x128xf32, #tpu.memory_space<vmem>>, %arg5: memref<4x128xf32, #tpu.memory_space<vmem>>) attributes {dimension_semantics = [], scalar_prefetch = 0 : i64, scratch_operands = 0 : i64, tpu.core_type = #tpu.core_type<tc>} {
    %c0 = arith.constant 0 : index
    %c0_0 = arith.constant 0 : index
    %0 = vector.load %arg4[%c0, %c0_0] : memref<4x128xf32, #tpu.memory_space<vmem>>, vector<4x128xf32>
    %1 = vector.shape_cast %0 : vector<4x128xf32> to vector<1x4x128xf32>
    %cst = arith.constant dense<0.000000e+00> : vector<1xf32>
    %2 = vector.multi_reduction <add>, %1, %cst [1, 2] : vector<1x4x128xf32> to vector<1xf32>
    %3 = vector.shape_cast %2 : vector<1xf32> to vector<1x1x1xf32>
    %4 = vector.extract %3[0, 0, 0] : f32 from vector<1x1x1xf32>
    %5 = vector.broadcast %4 : f32 to vector<1x1xf32>
    %cst_1 = arith.constant 0.001953125 : f32
    %6 = vector.broadcast %cst_1 : f32 to vector<1x1xf32>
    %7 = arith.mulf %5, %6 : vector<1x1xf32>
    %8 = vector.broadcast %7 : vector<1x1xf32> to vector<4x128xf32>
    %9 = arith.subf %0, %8 : vector<4x128xf32>
    %10 = arith.mulf %9, %9 : vector<4x128xf32>
    %11 = vector.shape_cast %10 : vector<4x128xf32> to vector<1x4x128xf32>
    %cst_2 = arith.constant dense<0.000000e+00> : vector<1xf32>
    %12 = vector.multi_reduction <add>, %11, %cst_2 [1, 2] : vector<1x4x128xf32> to vector<1xf32>
    %13 = vector.shape_cast %12 : vector<1xf32> to vector<1x1x1xf32>
    %14 = vector.extract %13[0, 0, 0] : f32 from vector<1x1x1xf32>
    %15 = vector.broadcast %14 : f32 to vector<1x1xf32>
    %16 = arith.mulf %7, %7 : vector<1x1xf32>
    %cst_3 = arith.constant 0.000000e+00 : f32
    %17 = vector.broadcast %cst_3 : f32 to vector<1x1xf32>
    %18 = arith.mulf %17, %16 : vector<1x1xf32>
    %19 = arith.subf %15, %18 : vector<1x1xf32>
    %cst_4 = arith.constant 0.001953125 : f32
    %20 = vector.broadcast %cst_4 : f32 to vector<1x1xf32>
    %21 = arith.mulf %19, %20 : vector<1x1xf32>
    %cst_5 = arith.constant 0.000000e+00 : f32
    %22 = vector.broadcast %cst_5 : f32 to vector<1x1xf32>
    %23 = arith.maximumf %21, %22 : vector<1x1xf32>
    %c0_6 = arith.constant 0 : index
    %c0_7 = arith.constant 0 : index
    %24 = vector.load %arg0[%c0_6, %c0_7] : memref<1x1xf32, #tpu.memory_space<vmem>>, vector<1x1xf32>
    %c0_8 = arith.constant 0 : index
    %c0_9 = arith.constant 0 : index
    %25 = vector.load %arg1[%c0_8, %c0_9] : memref<1x1xf32, #tpu.memory_space<vmem>>, vector<1x1xf32>
    %c0_10 = arith.constant 0 : index
    %c0_11 = arith.constant 0 : index
    %26 = vector.load %arg2[%c0_10, %c0_11] : memref<1x1xf32, #tpu.memory_space<vmem>>, vector<1x1xf32>
    %c0_12 = arith.constant 0 : index
    %c0_13 = arith.constant 0 : index
    %27 = vector.load %arg3[%c0_12, %c0_13] : memref<1x1xf32, #tpu.memory_space<vmem>>, vector<1x1xf32>
    %28 = arith.mulf %24, %7 : vector<1x1xf32>
    %29 = arith.addf %28, %25 : vector<1x1xf32>
    %30 = arith.mulf %24, %24 : vector<1x1xf32>
    %31 = arith.mulf %30, %23 : vector<1x1xf32>
    %cst_14 = arith.constant 9.99999974E-6 : f32
    %32 = vector.broadcast %cst_14 : f32 to vector<1x1xf32>
    %33 = arith.addf %31, %32 : vector<1x1xf32>
    %34 = math.rsqrt %33 : vector<1x1xf32>
    %35 = arith.mulf %26, %34 : vector<1x1xf32>
    %36 = arith.mulf %24, %35 : vector<1x1xf32>
    %37 = arith.subf %25, %29 : vector<1x1xf32>
    %38 = arith.mulf %37, %35 : vector<1x1xf32>
    %39 = arith.addf %38, %27 : vector<1x1xf32>
    %40 = vector.broadcast %36 : vector<1x1xf32> to vector<4x128xf32>
    %41 = arith.mulf %0, %40 : vector<4x128xf32>
    %42 = vector.broadcast %39 : vector<1x1xf32> to vector<4x128xf32>
    %43 = arith.addf %41, %42 : vector<4x128xf32>
    %cst_15 = arith.constant 0.000000e+00 : f32
    %44 = vector.broadcast %cst_15 : f32 to vector<4x128xf32>
    %45 = arith.maximumf %43, %44 : vector<4x128xf32>
    %46 = arith.addf %45, %0 : vector<4x128xf32>
    %c0_16 = arith.constant 0 : index
    %c0_17 = arith.constant 0 : index
    %47 = vector.load %arg5[%c0_16, %c0_17] : memref<4x128xf32, #tpu.memory_space<vmem>>, vector<4x128xf32>
    tpu.vector_store %arg5[%c0_16, %c0_17], %46 {strides = array<i32>} : memref<4x128xf32, #tpu.memory_space<vmem>>, vector<4x128xf32>,
    return
  }
}

</mosaic_0001>

<llo_original>
// kernel: tpu_custom_call.1
$region0: #{tpu_custom_call.1}
  #allocation0 [shape = 'u32[]', space=smem, size = 0x4, offset = 0x4, fixed_abs, tag = 'smem constant byte address 0x4 - core index']
  #allocation1 [shape = 'u32[72,128]{1,0:T(1,128)}', space=vmem, size = 0x9000, scoped, tag = 'internal scratch']
  #allocation2 [shape = 'f32[1,1]{1,0:T(1,128)S(1)}', space=vmem, size = 0x200, scoped, tag = 'scoped memory for tpu_custom_call.1']
  #allocation3 [shape = 'f32[1,1]{1,0:T(1,128)S(1)}', space=vmem, size = 0x200, scoped, tag = 'scoped memory for tpu_custom_call.1']
  #allocation4 [shape = 'f32[1,1]{1,0:T(1,128)S(1)}', space=vmem, size = 0x200, scoped, tag = 'scoped memory for tpu_custom_call.1']
  #allocation5 [shape = 'f32[1,1]{1,0:T(1,128)S(1)}', space=vmem, size = 0x200, scoped, tag = 'scoped memory for tpu_custom_call.1']
  %s0 = inlined_call_operand.<no memory space> [shape: f32[1,1], index: 0, kind: input, shape index: {}]
  %s1 = inlined_call_operand.<no memory space> [shape: f32[1,1], index: 1, kind: input, shape index: {}]
  %s2 = inlined_call_operand.<no memory space> [shape: f32[1,1], index: 2, kind: input, shape index: {}]
  %s3 = inlined_call_operand.<no memory space> [shape: f32[1,1], index: 3, kind: input, shape index: {}]
  %s4 = inlined_call_operand.vmem [shape: f32[4,128], index: 4, kind: input, shape index: {}]
  %s5 = inlined_call_operand.hbm [shape: f32[4,128], index: 5, kind: output, shape index: {}]
  %s6 = sld [smem:[#allocation0]]
  $region30: #{tpu_custom_call.1} parent=0
    _
  %s8 = ssub.s32 1, %s6
  %s9 = scalar_select 0, %s8, %s6
  %v10 = vstv %s0
  %11 = vst [vmem:[#allocation2] sm:$0x1] %v10
  %v12 = vstv %s1
  %13 = vst [vmem:[#allocation3] sm:$0x1] %v12
  %v14 = vstv %s2
  %15 = vst [vmem:[#allocation4] sm:$0x1] %v14
  %v16 = vstv %s3
  %17 = vst [vmem:[#allocation5] sm:$0x1] %v16
  $region1: #{tpu_custom_call.1} parent=0
    #allocation6 [shape = 'u8[2048]{0}', space=vmem, size = 0x800, scoped, tag = 'output window, operand 0, single buffered']
    #allocation7 [shape = 's32[1]{0}', space=sflag, size = 0x4, scoped, tag = 'scoped memory for tpu_custom_call.1']
    %18 = vsyncpa [#allocation7], 0
    // Predicated region
    $region2: #{tpu_custom_call.1} parent=1 // pred_check
      _
    $region3: #{tpu_custom_call.1} parent=1 // pred_check_branch
      %20 = sbr.rel (0) target = $region5
    $region4: #{tpu_custom_call.1} parent=1 // pred_region
      _
    $region5: #{tpu_custom_call.1} parent=1 // pred_fallthru
      _
    // Predicated region
    $region6: #{tpu_custom_call.1} parent=1 // pred_check
      _
    $region7: #{tpu_custom_call.1} parent=1 // pred_check_branch
      %22 = sbr.rel (0) target = $region9
    $region8: #{tpu_custom_call.1} parent=1 // pred_region
      _
    $region9: #{tpu_custom_call.1} parent=1 // pred_fallthru
      _
    // Predicated region
    $region10: #{tpu_custom_call.1} parent=1 // pred_check
      _
    $region11: #{tpu_custom_call.1} parent=1 // pred_check_branch
      %24 = sbr.rel (0) target = $region13
    $region12: #{tpu_custom_call.1} parent=1 // pred_region
      _
    $region13: #{tpu_custom_call.1} parent=1 // pred_fallthru
      _
    // Predicated region
    $region14: #{tpu_custom_call.1} parent=1 // pred_check
      _
    $region15: #{tpu_custom_call.1} parent=1 // pred_check_branch
      %26 = sbr.rel (0) target = $region17
    $region16: #{tpu_custom_call.1} parent=1 // pred_region
      _
    $region17: #{tpu_custom_call.1} parent=1 // pred_fallthru
      _
    // Predicated region
    $region18: #{tpu_custom_call.1} parent=1 // pred_check
      _
    $region19: #{tpu_custom_call.1} parent=1 // pred_check_branch
      %28 = sbr.rel (0) target = $region21
    $region20: #{tpu_custom_call.1} parent=1 // pred_region
      _
    $region21: #{tpu_custom_call.1} parent=1 // pred_fallthru
      _
    %v29 = vld [vmem:[%s4] sm:$0xf]
    %vm30 = vcmask 1043456
    %v31 = vsel %vm30, %v29, 0.0
    %32 = vadd.xlane.f32.xlu0 %v31
    %v33 = vpop.xlane.xlu0 %32
    %v34 = vrot.slane %v33, 4
    %v35 = vadd.f32 %v33, %v34
    %v36 = vrot.slane %v35, 2
    %v37 = vadd.f32 %v35, %v36
    %v38 = vrot.slane %v37, 1
    %v39 = vadd.f32 %v37, %v38
    %s40 = vtos %v39
    %v41 = vstv %s40
    %v42 = vmul.f32 %v41, 0.001953125
    %v43 = vsub.f32 %v29, %v42
    %v44 = vmul.f32 %v43, %v43
    %v45 = vsel %vm30, %v44, 0.0
    %46 = vadd.xlane.f32.xlu0 %v45
    %v47 = vpop.xlane.xlu0 %46
    %v48 = vrot.slane %v47, 4
    %v49 = vadd.f32 %v47, %v48
    %v50 = vrot.slane %v49, 2
    %v51 = vadd.f32 %v49, %v50
    %v52 = vrot.slane %v51, 1
    %v53 = vadd.f32 %v51, %v52
    %s54 = vtos %v53
    %v55 = vstv %s54
    %v56 = vmul.f32 %v42, %v42
    %v57 = vmul.f32 %v56, 0.0
    %v58 = vsub.f32 %v55, %v57
    %v59 = vmul.f32 %v58, 0.001953125
    %v60 = vmax.f32 %v59, 0.0
    %v61 = vld [vmem:[#allocation2] sm:$0x1]
    %v62 = vld [vmem:[#allocation3] sm:$0x1]
    %v63 = vld [vmem:[#allocation4] sm:$0x1]
    %v64 = vld [vmem:[#allocation5] sm:$0x1]
    %v65 = vmul.f32 %v61, %v42
    %v66 = vadd.f32 %v65, %v62
    %v67 = vmul.f32 %v61, %v61
    %v68 = vmul.f32 %v67, %v60
    %v69 = vadd.f32 %v68, 1e-05
    %v70 = vrsqrt.pop %v69
    %v71 = vmul.f32 %v70, %v69
    %v72 = vmul.f32 %v71, %v70
    %v73 = vmul.f32 0.5, %v72
    %v74 = vsub.f32 1.5, %v73
    %v75 = vmul.f32 %v70, %v74
    %vm76 = vweird.f32 %v69
    %vm77 = vweird.f32 %v70
    %vm78 = vmor %vm76, %vm77
    %v79 = vsel %vm78, %v70, %v75
    %v80 = vmul.f32 %v63, %v79
    %v81 = vmul.f32 %v61, %v80
    %v82 = vsub.f32 %v62, %v66
    %v83 = vmul.f32 %v82, %v80
    %v84 = vadd.f32 %v83, %v64
    %v86 = vperm.slane %v81, 0
    %87 = vset.pattern.permute.xlu0 0
    %88 = vperm.xlu0 %87, %v86
    %v89 = vpop.permute.xlu0 %88
    %v91 = vmul.f32 %v29, %v89
    %v93 = vperm.slane %v84, 0
    %94 = vset.pattern.permute.xlu0 0
    %95 = vperm.xlu0 %94, %v93
    %v96 = vpop.permute.xlu0 %95
    %v98 = vadd.f32 %v91, %v96
    %v99 = vmax.f32 %v98, 0.0
    %v100 = vadd.f32 %v99, %v29
    %101 = vst [vmem:[#allocation6] sm:$0xf] %v100
    // Predicated region
    $region22: #{tpu_custom_call.1} parent=1 // pred_check
      _
    $region23: #{tpu_custom_call.1} parent=1 // pred_check_branch
      %103 = sbr.rel (0) target = $region25
    $region24: #{tpu_custom_call.1} parent=1 // pred_region
      %105 = vsyncadd [#allocation7], 0
      %s107 = sshll.u32 [#allocation6], 4
      %s108 = int_to_ptr.vmem [resolvable:$true] %s107
      %s109 = sshll.u32 %s5, 4
      %s110 = int_to_ptr.hbm [resolvable:$true] %s109
      %112 = dma.vmem_to_hbm [thread:$0]  %s108, 64, %s110, [#allocation7]
    $region25: #{tpu_custom_call.1} parent=1 // pred_fallthru
      _
    // Predicated region
    $region26: #{tpu_custom_call.1} parent=1 // pred_check
      _
    $region27: #{tpu_custom_call.1} parent=1 // pred_check_branch
      %114 = sbr.rel (0) target = $region29
    $region28: #{tpu_custom_call.1} parent=1 // pred_region
      %116 = dma.done [#allocation7], 64
    $region29: #{tpu_custom_call.1} parent=1 // pred_fallthru
      _
    %117 = vsyncpa [#allocation7], 1

</llo_original>
